<compile_context>
chip_gen: v7x
topology: tpu7x:2x2x1
jax: 0.10.0
libtpu: 0.0.40
codegen_flags: <defaults>
</compile_context>

<pallas_src>
import jax
import jax.numpy as jnp
from jax.experimental import pallas as pl
from jax.experimental.pallas import tpu as pltpu

ATTR_DIM = 100          # fc2 input is cat([attr_dim, 100]) == 200  =>  attr_dim == 100
EMB_DIM = 768
D_PAD = 128             # lane-dense padded feature width
N_CAP = 27793           # torch: e = e.repeat(6,1,1)[:27793]
_HI = jax.lax.Precision.HIGHEST
_VMEM_LIMIT = 32 * 1024 * 1024


def _round_up(x, m):
    return ((x + m - 1) // m) * m


def _pad_last(x, target):
    pad = target - x.shape[-1]
    if pad <= 0:
        return x
    return jnp.pad(x, [(0, 0)] * (x.ndim - 1) + [(0, pad)])


# ----------------------------------------------------------------------------
# Kernel 1:  e = x @ W_fused + sigmoid(e_v) * w_sig + b_fused
#   where W_fused = w1 @ w2[:100], w_sig = colsum(w2[100:200]), b_fused = b1 @ w2[:100] + b2.
#   (Equivalent to fc2(cat[fc1(x), sigmoid(e_v).repeat(100)]) of the PyTorch module.)
# Operates on a (tm, 768) tile of the flattened (B*S, 768) embedding matrix;
# output width is padded to 128 lanes.
# ----------------------------------------------------------------------------
def _fc_kernel(x_ref, ev_ref, w_ref, wsig_ref, b_ref, out_ref):
    x = x_ref[...]                                                    # (tm, 768)
    sig = jax.nn.sigmoid(ev_ref[...])                                 # (tm, 1)
    acc = jnp.dot(x, w_ref[...], preferred_element_type=jnp.float32)  # (tm, 128) MXU
    out_ref[...] = acc + sig * wsig_ref[...] + b_ref[...]             # rank-1 VPU term + bias


def fc_forward(x_flat, ev_flat, w_fused, w_sig, b_fused, *, tm=512):
    M = x_flat.shape[0]
    D = w_fused.shape[1]                       # 128 (padded)
    tm_eff = min(tm, _round_up(M, 8))
    M_pad = _round_up(M, tm_eff)
    if M_pad > M:
        x_flat = jnp.pad(x_flat, ((0, M_pad - M), (0, 0)))
        ev_flat = jnp.pad(ev_flat, ((0, M_pad - M), (0, 0)))

    out = pl.pallas_call(
        _fc_kernel,
        out_shape=jax.ShapeDtypeStruct((M_pad, D), jnp.float32),
        grid=(M_pad // tm_eff,),
        in_specs=[
            pl.BlockSpec((tm_eff, EMB_DIM), lambda m: (m, 0)),
            pl.BlockSpec((tm_eff, 1), lambda m: (m, 0)),
            pl.BlockSpec((EMB_DIM, D), lambda m: (0, 0)),   # fetched once, reused
            pl.BlockSpec((1, D), lambda m: (0, 0)),
            pl.BlockSpec((1, D), lambda m: (0, 0)),
        ],
        out_specs=pl.BlockSpec((tm_eff, D), lambda m: (m, 0)),
        compiler_params=pltpu.CompilerParams(
            dimension_semantics=("parallel",),
            vmem_limit_bytes=_VMEM_LIMIT,
        ),
    )(x_flat, ev_flat, w_fused, w_sig, b_fused)
    return out[:M]


# ----------------------------------------------------------------------------
# Kernel 2: alpha = softmax(sum(e * i, -1) * mask, axis=1); out = sum(alpha * e, axis=1)
# The 6x repeat of e/mask is folded into the grid: grid = (batch_blocks, reps),
# e/mask blocks depend only on the batch-block index (reused across reps),
# i/out blocks are indexed (rep, batch_block).
# ----------------------------------------------------------------------------
def _attn_kernel(e_ref, m_ref, i_ref, out_ref):
    e = e_ref[...]                                               # (tn, S, Dp)
    m = m_ref[...]                                               # (tn, S)
    iv = i_ref[0]                                                # (tn, Dp)
    scores = jnp.sum(e * iv[:, None, :], axis=-1) * m            # (tn, S)
    smax = jnp.max(scores, axis=1, keepdims=True)
    p = jnp.exp(scores - smax)
    alpha = p * pl.reciprocal(jnp.sum(p, axis=1, keepdims=True), approx=False)
    out_ref[0] = jnp.sum(alpha[:, :, None] * e, axis=1)          # (tn, Dp)


def attn_forward(e_pad, mask, i_pad, n_rows, *, tn=512):
    B, S, Dp = e_pad.shape
    reps = -(-n_rows // B)                       # number of (possibly partial) repetitions used
    tn_eff = min(tn, _round_up(B, 8))
    B_pad = _round_up(B, tn_eff)
    if B_pad > B:
        e_pad = jnp.pad(e_pad, ((0, B_pad - B), (0, 0), (0, 0)))
        mask = jnp.pad(mask, ((0, B_pad - B), (0, 0)))

    rows_full = reps * B
    if rows_full > n_rows:
        i_pad = jnp.pad(i_pad, ((0, rows_full - n_rows), (0, 0)))
    i3 = i_pad.reshape(reps, B, Dp)              # i3[r, b] <-> tiled row r*B + b
    if B_pad > B:
        i3 = jnp.pad(i3, ((0, 0), (0, B_pad - B), (0, 0)))

    out3 = pl.pallas_call(
        _attn_kernel,
        out_shape=jax.ShapeDtypeStruct((reps, B_pad, Dp), jnp.float32),
        grid=(B_pad // tn_eff, reps),            # reps innermost -> e/mask DMA reused
        in_specs=[
            pl.BlockSpec((tn_eff, S, Dp), lambda b, r: (b, 0, 0)),
            pl.BlockSpec((tn_eff, S), lambda b, r: (b, 0)),
            pl.BlockSpec((1, tn_eff, Dp), lambda b, r: (r, b, 0)),
        ],
        out_specs=pl.BlockSpec((1, tn_eff, Dp), lambda b, r: (r, b, 0)),
        compiler_params=pltpu.CompilerParams(
            dimension_semantics=("parallel", "arbitrary"),
            vmem_limit_bytes=_VMEM_LIMIT,
        ),
    )(e_pad, mask, i3)

    return out3[:, :B, :].reshape(rows_full, Dp)[:n_rows]


# ----------------------------------------------------------------------------
# Full AttrEncoder forward (glue + kernels).
# ----------------------------------------------------------------------------
def attr_encoder_forward(params, e_a, e_v, mask, l, i_vec):
    del l  # unused by the reference forward
    B, S = e_a.shape
    N = i_vec.shape[0]                           # == min(6*B, 27793) in the original module

    # TODO(synk): data-dependent embedding gather stays in XLA; a Pallas DMA-gather
    # kernel would need a scalar-prefetch row table.
    emb = params["attr_embed"][e_a]              # (B, S, 768)
    x_flat = emb.reshape(B * S, EMB_DIM)
    ev_flat = e_v.reshape(B * S, 1).astype(jnp.float32)

    # Fold fc1 into fc2 and eliminate the concat:
    #   cat([h, sig.repeat(100)]) @ w2 == h @ w2[:100] + sig * colsum(w2[100:])
    # Precomputed once per call at HIGHEST precision (tiny), padded to 128 lanes.
    w2a = params["w2"][:ATTR_DIM]
    w_fused = _pad_last(jnp.dot(params["w1"], w2a, precision=_HI), D_PAD)
    w_sig = _pad_last(jnp.sum(params["w2"][ATTR_DIM:], axis=0, keepdims=True), D_PAD)
    b_fused = _pad_last(jnp.dot(params["b1"], w2a, precision=_HI) + params["b2"], D_PAD)

    e_pad = fc_forward(x_flat, ev_flat, w_fused, w_sig, b_fused).reshape(B, S, D_PAD)

    i_pad = _pad_last(i_vec.astype(jnp.float32), D_PAD)
    out = attn_forward(e_pad, mask.astype(jnp.float32), i_pad, N)
    return out[:, :ATTR_DIM]


# Pure-JAX reference (mirrors the PyTorch forward), matmuls at HIGHEST precision.
def attr_encoder_reference(params, e_a, e_v, mask, l, i_vec):
    del l
    N = i_vec.shape[0]
    emb = params["attr_embed"][e_a]
    e_a_p = jnp.dot(emb, params["w1"], precision=_HI) + params["b1"][0]
    e_v_s = jnp.repeat(jax.nn.sigmoid(e_v)[..., None], ATTR_DIM, axis=-1)
    cat = jnp.concatenate([e_a_p, e_v_s], axis=2)
    e = jnp.dot(cat, params["w2"], precision=_HI) + params["b2"][0]
    e = jnp.tile(e, (6, 1, 1))[:N]
    m = jnp.tile(mask, (6, 1))[:N].astype(jnp.float32)
    scores = jnp.sum(e * i_vec[:, None, :], axis=-1) * m
    alpha = jax.nn.softmax(scores, axis=1)
    return jnp.sum(alpha[:, :, None] * e, axis=1)


if __name__ == "__main__":
    key = jax.random.PRNGKey(0)
    k_emb, k_w1, k_w2, k_b1, k_b2, k_ea, k_ev, k_mask, k_i = jax.random.split(key, 9)

    B, S, V = 8, 8, 20
    N = min(6 * B, N_CAP)  # 48

    params = {
        "attr_embed": jax.random.normal(k_emb, (V, EMB_DIM), jnp.float32) * 0.02,
        # weights stored pre-transposed as (in, out) for row-major matmul
        "w1": jax.random.normal(k_w1, (EMB_DIM, ATTR_DIM), jnp.float32)
        * jnp.sqrt(2.0 / (EMB_DIM + ATTR_DIM)),
        "b1": jax.random.normal(k_b1, (1, ATTR_DIM), jnp.float32) * 0.01,
        "w2": jax.random.normal(k_w2, (2 * ATTR_DIM, ATTR_DIM), jnp.float32)
        * jnp.sqrt(2.0 / (3 * ATTR_DIM)),
        "b2": jax.random.normal(k_b2, (1, ATTR_DIM), jnp.float32) * 0.01,
    }

    e_a = jax.random.randint(k_ea, (B, S), 0, V, dtype=jnp.int32)
    e_v = jax.random.normal(k_ev, (B, S), jnp.float32)
    mask = (jax.random.uniform(k_mask, (B, S)) > 0.3).astype(jnp.float32)
    i_vec = jax.random.normal(k_i, (N, ATTR_DIM), jnp.float32)
    l = None  # unused, matches reference signature

    out = attr_encoder_forward(params, e_a, e_v, mask, l, i_vec)
    out = jax.block_until_ready(out)

    ref = attr_encoder_reference(params, e_a, e_v, mask, l, i_vec)
    assert out.shape == (N, ATTR_DIM)
    # Kernel matmul uses the MXU's default bf16-pass precision while the reference
    # runs at HIGHEST precision and the fc1/fc2 fold re-associates the math, so
    # allow a few-e-3 tolerance (expected diff is ~1e-3 or less).
    assert jnp.allclose(out, ref, rtol=5e-3, atol=5e-3), "mismatch vs JAX reference"

    print("KERNEL_OK")
</pallas_src>

<mosaic_0001>
module attributes {stable_mosaic.version = 11 : i64} {
  func.func @_fc_kernel(%arg0: i32, %arg1: memref<64x768xf32, #tpu.memory_space<vmem>>, %arg2: memref<64x1xf32, #tpu.memory_space<vmem>>, %arg3: memref<768x128xf32, #tpu.memory_space<vmem>>, %arg4: memref<1x128xf32, #tpu.memory_space<vmem>>, %arg5: memref<1x128xf32, #tpu.memory_space<vmem>>, %arg6: memref<64x128xf32, #tpu.memory_space<vmem>>) attributes {dimension_semantics = [#tpu.dimension_semantics<parallel>], iteration_bounds = array<i64: 1>, scalar_prefetch = 0 : i64, scratch_operands = 0 : i64, tpu.core_type = #tpu.core_type<tc>, window_params = [{transform_indices = @transform_0, window_bounds = array<i64: 64, 768>}, {transform_indices = @transform_1, window_bounds = array<i64: 64, 1>}, {pipeline_mode = #tpu.pipeline_mode<synchronous>, transform_indices = @transform_2, window_bounds = array<i64: 768, 128>}, {pipeline_mode = #tpu.pipeline_mode<synchronous>, transform_indices = @transform_3, window_bounds = array<i64: 1, 128>}, {pipeline_mode = #tpu.pipeline_mode<synchronous>, transform_indices = @transform_4, window_bounds = array<i64: 1, 128>}, {transform_indices = @transform_5, window_bounds = array<i64: 64, 128>}]} {
    %c0 = arith.constant 0 : index
    %c0_0 = arith.constant 0 : index
    %0 = vector.load %arg1[%c0, %c0_0] : memref<64x768xf32, #tpu.memory_space<vmem>>, vector<64x768xf32>
    %c0_1 = arith.constant 0 : index
    %c0_2 = arith.constant 0 : index
    %1 = vector.load %arg2[%c0_1, %c0_2] : memref<64x1xf32, #tpu.memory_space<vmem>>, vector<64x1xf32>
    %2 = arith.negf %1 : vector<64x1xf32>
    %3 = math.exp %2 : vector<64x1xf32>
    %cst = arith.constant 1.000000e+00 : f32
    %4 = vector.broadcast %cst : f32 to vector<64x1xf32>
    %5 = arith.addf %4, %3 : vector<64x1xf32>
    %6 = arith.divf %4, %5 : vector<64x1xf32>
    %c0_3 = arith.constant 0 : index
    %c0_4 = arith.constant 0 : index
    %7 = vector.load %arg3[%c0_3, %c0_4] : memref<768x128xf32, #tpu.memory_space<vmem>>, vector<768x128xf32>
    %cst_5 = arith.constant dense<0.000000e+00> : vector<64x128xf32>
    %8 = tpu.matmul %0, %7, %cst_5 {dimension_numbers = #tpu.dot_dimension_numbers<[1], [0], [0], [1], [0, 0, 1, 1], [], []>} : vector<64x768xf32>, vector<768x128xf32>, vector<64x128xf32> -> vector<64x128xf32>
    %c0_6 = arith.constant 0 : index
    %c0_7 = arith.constant 0 : index
    %9 = vector.load %arg4[%c0_6, %c0_7] : memref<1x128xf32, #tpu.memory_space<vmem>>, vector<1x128xf32>
    %10 = vector.broadcast %6 : vector<64x1xf32> to vector<64x128xf32>
    %11 = vector.broadcast %9 : vector<1x128xf32> to vector<64x128xf32>
    %12 = arith.mulf %10, %11 : vector<64x128xf32>
    %13 = arith.addf %8, %12 : vector<64x128xf32>
    %c0_8 = arith.constant 0 : index
    %c0_9 = arith.constant 0 : index
    %14 = vector.load %arg5[%c0_8, %c0_9] : memref<1x128xf32, #tpu.memory_space<vmem>>, vector<1x128xf32>
    %15 = vector.broadcast %14 : vector<1x128xf32> to vector<64x128xf32>
    %16 = arith.addf %13, %15 : vector<64x128xf32>
    %c0_10 = arith.constant 0 : index
    %c0_11 = arith.constant 0 : index
    %17 = vector.load %arg6[%c0_10, %c0_11] : memref<64x128xf32, #tpu.memory_space<vmem>>, vector<64x128xf32>
    tpu.vector_store %arg6[%c0_10, %c0_11], %16 {strides = array<i32>} : memref<64x128xf32, #tpu.memory_space<vmem>>, vector<64x128xf32>,
    return
  }
  func.func @transform_0(%arg0: i32) -> (i32, i32) {
    %c0_i32 = arith.constant 0 : i32
    %c0_i32_0 = arith.constant 0 : i32
    return %arg0, %c0_i32 : i32, i32
  }
  func.func @transform_1(%arg0: i32) -> (i32, i32) {
    %c0_i32 = arith.constant 0 : i32
    %c0_i32_0 = arith.constant 0 : i32
    return %arg0, %c0_i32 : i32, i32
  }
  func.func @transform_2(%arg0: i32) -> (i32, i32) {
    %c0_i32 = arith.constant 0 : i32
    %c0_i32_0 = arith.constant 0 : i32
    %c0_i32_1 = arith.constant 0 : i32
    return %c0_i32, %c0_i32_0 : i32, i32
  }
  func.func @transform_3(%arg0: i32) -> (i32, i32) {
    %c0_i32 = arith.constant 0 : i32
    %c0_i32_0 = arith.constant 0 : i32
    %c0_i32_1 = arith.constant 0 : i32
    return %c0_i32, %c0_i32_0 : i32, i32
  }
  func.func @transform_4(%arg0: i32) -> (i32, i32) {
    %c0_i32 = arith.constant 0 : i32
    %c0_i32_0 = arith.constant 0 : i32
    %c0_i32_1 = arith.constant 0 : i32
    return %c0_i32, %c0_i32_0 : i32, i32
  }
  func.func @transform_5(%arg0: i32) -> (i32, i32) {
    %c0_i32 = arith.constant 0 : i32
    %c0_i32_0 = arith.constant 0 : i32
    return %arg0, %c0_i32 : i32, i32
  }
}

</mosaic_0001>

<llo_original>
// kernel: tpu_custom_call.1
$region0: #{tpu_custom_call.1}
  #allocation0 [shape = 'u32[]', space=smem, size = 0x4, offset = 0x4, fixed_abs, tag = 'smem constant byte address 0x4 - core index']
  #allocation1 [shape = 'u32[144,128]{1,0:T(1,128)}', space=vmem, size = 0x12000, scoped, tag = 'internal scratch']
  %s0 = inlined_call_operand.hbm [shape: f32[64,768], index: 0, kind: input, shape index: {}]
  %s1 = inlined_call_operand.vmem [shape: f32[64,1], index: 1, kind: input, shape index: {}]
  %s2 = inlined_call_operand.hbm [shape: f32[768,128], index: 2, kind: input, shape index: {}]
  %s3 = inlined_call_operand.vmem [shape: f32[1,128], index: 3, kind: input, shape index: {}]
  %s4 = inlined_call_operand.vmem [shape: f32[1,128], index: 4, kind: input, shape index: {}]
  %s5 = inlined_call_operand.hbm [shape: f32[64,128], index: 5, kind: output, shape index: {}]
  %s6 = sld [smem:[#allocation0]]
  $region38: #{tpu_custom_call.1} parent=0
    _
  %s8 = ssub.s32 1, %s6
  %s9 = scalar_select 0, %s8, %s6
  $region1: #{tpu_custom_call.1} parent=0
    #allocation2 [shape = 'u8[196608]{0}', space=vmem, size = 0x30000, scoped, tag = 'input window, operand 0, single buffered']
    #allocation3 [shape = 's32[1]{0}', space=sflag, size = 0x4, scoped, tag = 'scoped memory for tpu_custom_call.1']
    #allocation4 [shape = 's32[1]{0}', space=sflag, size = 0x4, scoped, tag = 'scoped memory for tpu_custom_call.1']
    #allocation5 [shape = 'u8[393216]{0}', space=vmem, size = 0x60000, scoped, tag = 'input window, operand 2, single buffered']
    #allocation6 [shape = 's32[1]{0}', space=sflag, size = 0x4, scoped, tag = 'scoped memory for tpu_custom_call.1']
    #allocation7 [shape = 'u8[32768]{0}', space=vmem, size = 0x8000, scoped, tag = 'output window, operand 0, single buffered']
    %10 = vsyncpa [#allocation3], 0
    %11 = vsyncpa [#allocation6], 0
    %12 = vsyncpa [#allocation4], 0
    // Predicated region
    $region2: #{tpu_custom_call.1} parent=1 // pred_check
      _
    $region3: #{tpu_custom_call.1} parent=1 // pred_check_branch
      %14 = sbr.rel (0) target = $region5
    $region4: #{tpu_custom_call.1} parent=1 // pred_region
      %s16 = ssub.s32 6144, 6144
      %17 = vsyncadd [#allocation3], %s16
      %s18 = sshll.u32 [#allocation2], 4
      %s19 = int_to_ptr.vmem [resolvable:$true] %s18
      %24 = dma.hbm_to_vmem [thread:$0]  %s0, 6144, %s19, [#allocation3], 768, 768, 48
    $region5: #{tpu_custom_call.1} parent=1 // pred_fallthru
      _
    // Predicated region
    $region6: #{tpu_custom_call.1} parent=1 // pred_check
      _
    $region7: #{tpu_custom_call.1} parent=1 // pred_check_branch
      %26 = sbr.rel (0) target = $region9
    $region8: #{tpu_custom_call.1} parent=1 // pred_region
      _
    $region9: #{tpu_custom_call.1} parent=1 // pred_fallthru
      _
    // Predicated region
    $region10: #{tpu_custom_call.1} parent=1 // pred_check
      _
    $region11: #{tpu_custom_call.1} parent=1 // pred_check_branch
      %28 = sbr.rel (0) target = $region13
    $region12: #{tpu_custom_call.1} parent=1 // pred_region
      %s30 = ssub.s32 12288, 12288
      %31 = vsyncadd [#allocation6], %s30
      %s32 = sshll.u32 [#allocation5], 4
      %s33 = int_to_ptr.vmem [resolvable:$true] %s32
      %38 = dma.hbm_to_vmem [thread:$0]  %s2, 12288, %s33, [#allocation6], 128, 128, 8
    $region13: #{tpu_custom_call.1} parent=1 // pred_fallthru
      _
    // Predicated region
    $region14: #{tpu_custom_call.1} parent=1 // pred_check
      _
    $region15: #{tpu_custom_call.1} parent=1 // pred_check_branch
      %40 = sbr.rel (0) target = $region17
    $region16: #{tpu_custom_call.1} parent=1 // pred_region
      _
    $region17: #{tpu_custom_call.1} parent=1 // pred_fallthru
      _
    // Predicated region
    $region18: #{tpu_custom_call.1} parent=1 // pred_check
      _
    $region19: #{tpu_custom_call.1} parent=1 // pred_check_branch
      %42 = sbr.rel (0) target = $region21
    $region20: #{tpu_custom_call.1} parent=1 // pred_region
      _
    $region21: #{tpu_custom_call.1} parent=1 // pred_fallthru
      _
    // Predicated region
    $region22: #{tpu_custom_call.1} parent=1 // pred_check
      _
    $region23: #{tpu_custom_call.1} parent=1 // pred_check_branch
      %44 = sbr.rel (0) target = $region25
    $region24: #{tpu_custom_call.1} parent=1 // pred_region
      %45 = dma.done [#allocation3], 6144
    $region25: #{tpu_custom_call.1} parent=1 // pred_fallthru
      _
    // Predicated region
    $region26: #{tpu_custom_call.1} parent=1 // pred_check
      _
    $region27: #{tpu_custom_call.1} parent=1 // pred_check_branch
      %47 = sbr.rel (0) target = $region29
    $region28: #{tpu_custom_call.1} parent=1 // pred_region
      %48 = dma.done [#allocation6], 12288
    $region29: #{tpu_custom_call.1} parent=1 // pred_fallthru
      _
    %v49 = vld [vmem:[#allocation2] sm:$0xff]
    %v50 = vld [vmem:[#allocation2 + $0x8] sm:$0xff]
    %v51 = vld [vmem:[#allocation2 + $0x10] sm:$0xff]
    %v52 = vld [vmem:[#allocation2 + $0x18] sm:$0xff]
    %v53 = vld [vmem:[#allocation2 + $0x20] sm:$0xff]
    %v54 = vld [vmem:[#allocation2 + $0x28] sm:$0xff]
    %v55 = vld [vmem:[#allocation2 + $0x30] sm:$0xff]
    %v56 = vld [vmem:[#allocation2 + $0x38] sm:$0xff]
    %v57 = vld [vmem:[#allocation2 + $0x40] sm:$0xff]
    %v58 = vld [vmem:[#allocation2 + $0x48] sm:$0xff]
    %v59 = vld [vmem:[#allocation2 + $0x50] sm:$0xff]
    %v60 = vld [vmem:[#allocation2 + $0x58] sm:$0xff]
    %v61 = vld [vmem:[#allocation2 + $0x60] sm:$0xff]
    %v62 = vld [vmem:[#allocation2 + $0x68] sm:$0xff]
    %v63 = vld [vmem:[#allocation2 + $0x70] sm:$0xff]
    %v64 = vld [vmem:[#allocation2 + $0x78] sm:$0xff]
    %v65 = vld [vmem:[#allocation2 + $0x80] sm:$0xff]
    %v66 = vld [vmem:[#allocation2 + $0x88] sm:$0xff]
    %v67 = vld [vmem:[#allocation2 + $0x90] sm:$0xff]
    %v68 = vld [vmem:[#allocation2 + $0x98] sm:$0xff]
    %v69 = vld [vmem:[#allocation2 + $0xa0] sm:$0xff]
    %v70 = vld [vmem:[#allocation2 + $0xa8] sm:$0xff]
    %v71 = vld [vmem:[#allocation2 + $0xb0] sm:$0xff]
    %v72 = vld [vmem:[#allocation2 + $0xb8] sm:$0xff]
    %v73 = vld [vmem:[#allocation2 + $0xc0] sm:$0xff]
    %v74 = vld [vmem:[#allocation2 + $0xc8] sm:$0xff]
    %v75 = vld [vmem:[#allocation2 + $0xd0] sm:$0xff]
    %v76 = vld [vmem:[#allocation2 + $0xd8] sm:$0xff]
    %v77 = vld [vmem:[#allocation2 + $0xe0] sm:$0xff]
    %v78 = vld [vmem:[#allocation2 + $0xe8] sm:$0xff]
    %v79 = vld [vmem:[#allocation2 + $0xf0] sm:$0xff]
    %v80 = vld [vmem:[#allocation2 + $0xf8] sm:$0xff]
    %v81 = vld [vmem:[#allocation2 + $0x100] sm:$0xff]
    %v82 = vld [vmem:[#allocation2 + $0x108] sm:$0xff]
    %v83 = vld [vmem:[#allocation2 + $0x110] sm:$0xff]
    %v84 = vld [vmem:[#allocation2 + $0x118] sm:$0xff]
    %v85 = vld [vmem:[#allocation2 + $0x120] sm:$0xff]
    %v86 = vld [vmem:[#allocation2 + $0x128] sm:$0xff]
    %v87 = vld [vmem:[#allocation2 + $0x130] sm:$0xff]
    %v88 = vld [vmem:[#allocation2 + $0x138] sm:$0xff]
    %v89 = vld [vmem:[#allocation2 + $0x140] sm:$0xff]
    %v90 = vld [vmem:[#allocation2 + $0x148] sm:$0xff]
    %v91 = vld [vmem:[#allocation2 + $0x150] sm:$0xff]
    %v92 = vld [vmem:[#allocation2 + $0x158] sm:$0xff]
    %v93 = vld [vmem:[#allocation2 + $0x160] sm:$0xff]
    %v94 = vld [vmem:[#allocation2 + $0x168] sm:$0xff]
    %v95 = vld [vmem:[#allocation2 + $0x170] sm:$0xff]
    %v96 = vld [vmem:[#allocation2 + $0x178] sm:$0xff]
    %v97 = vld [vmem:[%s1] sm:$0xff]
    %v98 = vld [vmem:[%s1 + $0x8] sm:$0xff]
    %v99 = vld [vmem:[%s1 + $0x10] sm:$0xff]
    %v100 = vld [vmem:[%s1 + $0x18] sm:$0xff]
    %v101 = vld [vmem:[%s1 + $0x20] sm:$0xff]
    %v102 = vld [vmem:[%s1 + $0x28] sm:$0xff]
    %v103 = vld [vmem:[%s1 + $0x30] sm:$0xff]
    %v104 = vld [vmem:[%s1 + $0x38] sm:$0xff]
    %v105 = vxor.u32 %v97, 2147483648
    %v106 = vxor.u32 %v98, 2147483648
    %v107 = vxor.u32 %v99, 2147483648
    %v108 = vxor.u32 %v100, 2147483648
    %v109 = vxor.u32 %v101, 2147483648
    %v110 = vxor.u32 %v102, 2147483648
    %v111 = vxor.u32 %v103, 2147483648
    %v112 = vxor.u32 %v104, 2147483648
    %v113 = vmul.f32 %v105, 1.442695
    %v114 = vpow.pop %v113
    %v115 = vmul.f32 %v106, 1.442695
    %v116 = vpow.pop %v115
    %v117 = vmul.f32 %v107, 1.442695
    %v118 = vpow.pop %v117
    %v119 = vmul.f32 %v108, 1.442695
    %v120 = vpow.pop %v119
    %v121 = vmul.f32 %v109, 1.442695
    %v122 = vpow.pop %v121
    %v123 = vmul.f32 %v110, 1.442695
    %v124 = vpow.pop %v123
    %v125 = vmul.f32 %v111, 1.442695
    %v126 = vpow.pop %v125
    %v127 = vmul.f32 %v112, 1.442695
    %v128 = vpow.pop %v127
    %v129 = vadd.f32 %v114, 1.0
    %v130 = vadd.f32 %v116, 1.0
    %v131 = vadd.f32 %v118, 1.0
    %v132 = vadd.f32 %v120, 1.0
    %v133 = vadd.f32 %v122, 1.0
    %v134 = vadd.f32 %v124, 1.0
    %v135 = vadd.f32 %v126, 1.0
    %v136 = vadd.f32 %v128, 1.0
    %v137 = vrcp.pop %v129
    %v138 = vmul.f32 1.0, %v137
    %v139 = vrcp.pop %v130
    %v140 = vmul.f32 1.0, %v139
    %v141 = vrcp.pop %v131
    %v142 = vmul.f32 1.0, %v141
    %v143 = vrcp.pop %v132
    %v144 = vmul.f32 1.0, %v143
    %v145 = vrcp.pop %v133
    %v146 = vmul.f32 1.0, %v145
    %v147 = vrcp.pop %v134
    %v148 = vmul.f32 1.0, %v147
    %v149 = vrcp.pop %v135
    %v150 = vmul.f32 1.0, %v149
    %v151 = vrcp.pop %v136
    %v152 = vmul.f32 1.0, %v151
    %v153 = vld [vmem:[#allocation5] sm:$0xff]
    %v154 = vld [vmem:[#allocation5 + $0x8] sm:$0xff]
    %v155 = vld [vmem:[#allocation5 + $0x10] sm:$0xff]
    %v156 = vld [vmem:[#allocation5 + $0x18] sm:$0xff]
    %v157 = vld [vmem:[#allocation5 + $0x20] sm:$0xff]
    %v158 = vld [vmem:[#allocation5 + $0x28] sm:$0xff]
    %v159 = vld [vmem:[#allocation5 + $0x30] sm:$0xff]
    %v160 = vld [vmem:[#allocation5 + $0x38] sm:$0xff]
    %v161 = vld [vmem:[#allocation5 + $0x40] sm:$0xff]
    %v162 = vld [vmem:[#allocation5 + $0x48] sm:$0xff]
    %v163 = vld [vmem:[#allocation5 + $0x50] sm:$0xff]
    %v164 = vld [vmem:[#allocation5 + $0x58] sm:$0xff]
    %v165 = vld [vmem:[#allocation5 + $0x60] sm:$0xff]
    %v166 = vld [vmem:[#allocation5 + $0x68] sm:$0xff]
    %v167 = vld [vmem:[#allocation5 + $0x70] sm:$0xff]
    %v168 = vld [vmem:[#allocation5 + $0x78] sm:$0xff]
    %v169 = vld [vmem:[#allocation5 + $0x80] sm:$0xff]
    %v170 = vld [vmem:[#allocation5 + $0x88] sm:$0xff]
    %v171 = vld [vmem:[#allocation5 + $0x90] sm:$0xff]
    %v172 = vld [vmem:[#allocation5 + $0x98] sm:$0xff]
    %v173 = vld [vmem:[#allocation5 + $0xa0] sm:$0xff]
    %v174 = vld [vmem:[#allocation5 + $0xa8] sm:$0xff]
    %v175 = vld [vmem:[#allocation5 + $0xb0] sm:$0xff]
    %v176 = vld [vmem:[#allocation5 + $0xb8] sm:$0xff]
    %v177 = vld [vmem:[#allocation5 + $0xc0] sm:$0xff]
    %v178 = vld [vmem:[#allocation5 + $0xc8] sm:$0xff]
    %v179 = vld [vmem:[#allocation5 + $0xd0] sm:$0xff]
    %v180 = vld [vmem:[#allocation5 + $0xd8] sm:$0xff]
    %v181 = vld [vmem:[#allocation5 + $0xe0] sm:$0xff]
    %v182 = vld [vmem:[#allocation5 + $0xe8] sm:$0xff]
    %v183 = vld [vmem:[#allocation5 + $0xf0] sm:$0xff]
    %v184 = vld [vmem:[#allocation5 + $0xf8] sm:$0xff]
    %v185 = vld [vmem:[#allocation5 + $0x100] sm:$0xff]
    %v186 = vld [vmem:[#allocation5 + $0x108] sm:$0xff]
    %v187 = vld [vmem:[#allocation5 + $0x110] sm:$0xff]
    %v188 = vld [vmem:[#allocation5 + $0x118] sm:$0xff]
    %v189 = vld [vmem:[#allocation5 + $0x120] sm:$0xff]
    %v190 = vld [vmem:[#allocation5 + $0x128] sm:$0xff]
    %v191 = vld [vmem:[#allocation5 + $0x130] sm:$0xff]
    %v192 = vld [vmem:[#allocation5 + $0x138] sm:$0xff]
    %v193 = vld [vmem:[#allocation5 + $0x140] sm:$0xff]
    %v194 = vld [vmem:[#allocation5 + $0x148] sm:$0xff]
    %v195 = vld [vmem:[#allocation5 + $0x150] sm:$0xff]
    %v196 = vld [vmem:[#allocation5 + $0x158] sm:$0xff]
    %v197 = vld [vmem:[#allocation5 + $0x160] sm:$0xff]
    %v198 = vld [vmem:[#allocation5 + $0x168] sm:$0xff]
    %v199 = vld [vmem:[#allocation5 + $0x170] sm:$0xff]
    %v200 = vld [vmem:[#allocation5 + $0x178] sm:$0xff]
    %v201 = vld [vmem:[#allocation5 + $0x180] sm:$0xff]
    %v202 = vld [vmem:[#allocation5 + $0x188] sm:$0xff]
    %v203 = vld [vmem:[#allocation5 + $0x190] sm:$0xff]
    %v204 = vld [vmem:[#allocation5 + $0x198] sm:$0xff]
    %v205 = vld [vmem:[#allocation5 + $0x1a0] sm:$0xff]
    %v206 = vld [vmem:[#allocation5 + $0x1a8] sm:$0xff]
    %v207 = vld [vmem:[#allocation5 + $0x1b0] sm:$0xff]
    %v208 = vld [vmem:[#allocation5 + $0x1b8] sm:$0xff]
    %v209 = vld [vmem:[#allocation5 + $0x1c0] sm:$0xff]
    %v210 = vld [vmem:[#allocation5 + $0x1c8] sm:$0xff]
    %v211 = vld [vmem:[#allocation5 + $0x1d0] sm:$0xff]
    %v212 = vld [vmem:[#allocation5 + $0x1d8] sm:$0xff]
    %v213 = vld [vmem:[#allocation5 + $0x1e0] sm:$0xff]
    %v214 = vld [vmem:[#allocation5 + $0x1e8] sm:$0xff]
    %v215 = vld [vmem:[#allocation5 + $0x1f0] sm:$0xff]
    %v216 = vld [vmem:[#allocation5 + $0x1f8] sm:$0xff]
    %v217 = vld [vmem:[#allocation5 + $0x200] sm:$0xff]
    %v218 = vld [vmem:[#allocation5 + $0x208] sm:$0xff]
    %v219 = vld [vmem:[#allocation5 + $0x210] sm:$0xff]
    %v220 = vld [vmem:[#allocation5 + $0x218] sm:$0xff]
    %v221 = vld [vmem:[#allocation5 + $0x220] sm:$0xff]
    %v222 = vld [vmem:[#allocation5 + $0x228] sm:$0xff]
    %v223 = vld [vmem:[#allocation5 + $0x230] sm:$0xff]
    %v224 = vld [vmem:[#allocation5 + $0x238] sm:$0xff]
    %v225 = vld [vmem:[#allocation5 + $0x240] sm:$0xff]
    %v226 = vld [vmem:[#allocation5 + $0x248] sm:$0xff]
    %v227 = vld [vmem:[#allocation5 + $0x250] sm:$0xff]
    %v228 = vld [vmem:[#allocation5 + $0x258] sm:$0xff]
    %v229 = vld [vmem:[#allocation5 + $0x260] sm:$0xff]
    %v230 = vld [vmem:[#allocation5 + $0x268] sm:$0xff]
    %v231 = vld [vmem:[#allocation5 + $0x270] sm:$0xff]
    %v232 = vld [vmem:[#allocation5 + $0x278] sm:$0xff]
    %v233 = vld [vmem:[#allocation5 + $0x280] sm:$0xff]
    %v234 = vld [vmem:[#allocation5 + $0x288] sm:$0xff]
    %v235 = vld [vmem:[#allocation5 + $0x290] sm:$0xff]
    %v236 = vld [vmem:[#allocation5 + $0x298] sm:$0xff]
    %v237 = vld [vmem:[#allocation5 + $0x2a0] sm:$0xff]
    %v238 = vld [vmem:[#allocation5 + $0x2a8] sm:$0xff]
    %v239 = vld [vmem:[#allocation5 + $0x2b0] sm:$0xff]
    %v240 = vld [vmem:[#allocation5 + $0x2b8] sm:$0xff]
    %v241 = vld [vmem:[#allocation5 + $0x2c0] sm:$0xff]
    %v242 = vld [vmem:[#allocation5 + $0x2c8] sm:$0xff]
    %v243 = vld [vmem:[#allocation5 + $0x2d0] sm:$0xff]
    %v244 = vld [vmem:[#allocation5 + $0x2d8] sm:$0xff]
    %v245 = vld [vmem:[#allocation5 + $0x2e0] sm:$0xff]
    %v246 = vld [vmem:[#allocation5 + $0x2e8] sm:$0xff]
    %v247 = vld [vmem:[#allocation5 + $0x2f0] sm:$0xff]
    %v248 = vld [vmem:[#allocation5 + $0x2f8] sm:$0xff]
    %v249 = vld [vmem:[%s3] sm:$0x1]
    %251 = vset.pattern.permute.xlu0 0
    %252 = vperm.xlu0 %251, %v138
    %v253 = vpop.permute.xlu0 %252
    %256 = vset.pattern.permute.xlu0 0
    %257 = vperm.xlu0 %256, %v140
    %v258 = vpop.permute.xlu0 %257
    %261 = vset.pattern.permute.xlu0 0
    %262 = vperm.xlu0 %261, %v142
    %v263 = vpop.permute.xlu0 %262
    %266 = vset.pattern.permute.xlu0 0
    %267 = vperm.xlu0 %266, %v144
    %v268 = vpop.permute.xlu0 %267
    %271 = vset.pattern.permute.xlu0 0
    %272 = vperm.xlu0 %271, %v146
    %v273 = vpop.permute.xlu0 %272
    %276 = vset.pattern.permute.xlu0 0
    %277 = vperm.xlu0 %276, %v148
    %v278 = vpop.permute.xlu0 %277
    %281 = vset.pattern.permute.xlu0 0
    %282 = vperm.xlu0 %281, %v150
    %v283 = vpop.permute.xlu0 %282
    %286 = vset.pattern.permute.xlu0 0
    %287 = vperm.xlu0 %286, %v152
    %v288 = vpop.permute.xlu0 %287
    %v291 = vlaneseq
    %v292 = vshrl.u32 %v291, 7
    %v293 = vsub.s32 0, %v292
    %v294 = vrot.slane %v249, %v293
    %v296 = vmul.f32 %v253, %v294
    %v297 = vmul.f32 %v258, %v294
    %v298 = vmul.f32 %v263, %v294
    %v299 = vmul.f32 %v268, %v294
    %v300 = vmul.f32 %v273, %v294
    %v301 = vmul.f32 %v278, %v294
    %v302 = vmul.f32 %v283, %v294
    %v303 = vmul.f32 %v288, %v294
    %304 = vmatprep.subr.mxu0 0.0
    %305 = vmatpush1.msra.mxu0 %v153
    %306 = vmatprep.subr.mxu0 0.0
    %307 = vmatpush1.msra.mxu0 %v154
    %308 = vmatprep.subr.mxu0 0.0
    %309 = vmatpush1.msra.mxu0 %v155
    %310 = vmatprep.subr.mxu0 0.0
    %311 = vmatpush1.msra.mxu0 %v156
    %312 = vmatprep.subr.mxu0 0.0
    %313 = vmatpush1.msra.mxu0 %v157
    %314 = vmatprep.subr.mxu0 0.0
    %315 = vmatpush1.msra.mxu0 %v158
    %316 = vmatprep.subr.mxu0 0.0
    %317 = vmatpush1.msra.mxu0 %v159
    %318 = vmatprep.subr.mxu0 0.0
    %319 = vmatpush1.msra.mxu0 %v160
    %320 = vmatprep.subr.mxu0 0.0
    %321 = vmatpush1.msra.mxu0 %v161
    %322 = vmatprep.subr.mxu0 0.0
    %323 = vmatpush1.msra.mxu0 %v162
    %324 = vmatprep.subr.mxu0 0.0
    %325 = vmatpush1.msra.mxu0 %v163
    %326 = vmatprep.subr.mxu0 0.0
    %327 = vmatpush1.msra.mxu0 %v164
    %328 = vmatprep.subr.mxu0 0.0
    %329 = vmatpush1.msra.mxu0 %v165
    %330 = vmatprep.subr.mxu0 0.0
    %331 = vmatpush1.msra.mxu0 %v166
    %332 = vmatprep.subr.mxu0 0.0
    %333 = vmatpush1.msra.mxu0 %v167
    %334 = vmatprep.subr.mxu0 0.0
    %335 = vmatpush1.msra.mxu0 %v168
    %336 = vmatprep.subr.mxu0 0.0
    %337 = vmatpush1.msra.mxu0 %v169
    %338 = vmatprep.subr.mxu0 0.0
    %339 = vmatpush1.msra.mxu0 %v170
    %340 = vmatprep.subr.mxu0 0.0
    %341 = vmatpush1.msra.mxu0 %v171
    %342 = vmatprep.subr.mxu0 0.0
    %343 = vmatpush1.msra.mxu0 %v172
    %344 = vmatprep.subr.mxu0 0.0
    %345 = vmatpush1.msra.mxu0 %v173
    %346 = vmatprep.subr.mxu0 0.0
    %347 = vmatpush1.msra.mxu0 %v174
    %348 = vmatprep.subr.mxu0 0.0
    %349 = vmatpush1.msra.mxu0 %v175
    %350 = vmatprep.subr.mxu0 0.0
    %351 = vmatpush1.msra.mxu0 %v176
    %352 = vmatprep.subr.mxu0 0.0
    %353 = vmatpush1.msra.mxu0 %v177
    %354 = vmatprep.subr.mxu0 0.0
    %355 = vmatpush1.msra.mxu0 %v178
    %356 = vmatprep.subr.mxu0 0.0
    %357 = vmatpush1.msra.mxu0 %v179
    %358 = vmatprep.subr.mxu0 0.0
    %359 = vmatpush1.msra.mxu0 %v180
    %360 = vmatprep.subr.mxu0 0.0
    %361 = vmatpush1.msra.mxu0 %v181
    %362 = vmatprep.subr.mxu0 0.0
    %363 = vmatpush1.msra.mxu0 %v182
    %364 = vmatprep.subr.mxu0 0.0
    %365 = vmatpush1.msra.mxu0 %v183
    %366 = vmatprep.subr.mxu0 0.0
    %367 = vmatpush1.msra.mxu0 %v184
    %368 = vmatprep.mubr.f32.mxu0 %v50
    %369 = vmatmul.mubr.f32.gmra.mrb[0].mxu0 %v49
    %v370 = vpop.f32.mrb[0].mxu0
    %v371 = vadd.f32 %v296, %v370
    %v372 = vpop.f32.mrb[0].mxu0
    %373 = vmatprep.mubr.f32.mxu0 %v56
    %374 = vmatmul.mubr.f32.gmra.mrb[0].mxu0 %v55
    %v375 = vpop.f32.mrb[0].mxu0
    %v376 = vadd.f32 %v297, %v375
    %v377 = vpop.f32.mrb[0].mxu0
    %378 = vmatprep.mubr.f32.mxu0 %v62
    %379 = vmatmul.mubr.f32.gmra.mrb[0].mxu0 %v61
    %v380 = vpop.f32.mrb[0].mxu0
    %v381 = vadd.f32 %v298, %v380
    %v382 = vpop.f32.mrb[0].mxu0
    %383 = vmatprep.mubr.f32.mxu0 %v68
    %384 = vmatmul.mubr.f32.gmra.mrb[0].mxu0 %v67
    %v385 = vpop.f32.mrb[0].mxu0
    %v386 = vadd.f32 %v299, %v385
    %v387 = vpop.f32.mrb[0].mxu0
    %388 = vmatprep.mubr.f32.mxu0 %v74
    %389 = vmatmul.mubr.f32.gmra.mrb[0].mxu0 %v73
    %v390 = vpop.f32.mrb[0].mxu0
    %v391 = vadd.f32 %v300, %v390
    %v392 = vpop.f32.mrb[0].mxu0
    %393 = vmatprep.mubr.f32.mxu0 %v80
    %394 = vmatmul.mubr.f32.gmra.mrb[0].mxu0 %v79
    %v395 = vpop.f32.mrb[0].mxu0
    %v396 = vadd.f32 %v301, %v395
    %v397 = vpop.f32.mrb[0].mxu0
    %398 = vmatprep.mubr.f32.mxu0 %v86
    %399 = vmatmul.mubr.f32.gmra.mrb[0].mxu0 %v85
    %v400 = vpop.f32.mrb[0].mxu0
    %v401 = vadd.f32 %v302, %v400
    %v402 = vpop.f32.mrb[0].mxu0
    %403 = vmatprep.mubr.f32.mxu0 %v92
    %404 = vmatmul.mubr.f32.gmra.mrb[0].mxu0 %v91
    %v405 = vpop.f32.mrb[0].mxu0
    %v406 = vadd.f32 %v303, %v405
    %v407 = vpop.f32.mrb[0].mxu0
    %408 = vdwg.mxu0
    %409 = vmatprep.subr.mxu0 0.0
    %410 = vmatpush1.msra.mxu0 %v185
    %411 = vmatprep.subr.mxu0 0.0
    %412 = vmatpush1.msra.mxu0 %v186
    %413 = vmatprep.subr.mxu0 0.0
    %414 = vmatpush1.msra.mxu0 %v187
    %415 = vmatprep.subr.mxu0 0.0
    %416 = vmatpush1.msra.mxu0 %v188
    %417 = vmatprep.subr.mxu0 0.0
    %418 = vmatpush1.msra.mxu0 %v189
    %419 = vmatprep.subr.mxu0 0.0
    %420 = vmatpush1.msra.mxu0 %v190
    %421 = vmatprep.subr.mxu0 0.0
    %422 = vmatpush1.msra.mxu0 %v191
    %423 = vmatprep.subr.mxu0 0.0
    %424 = vmatpush1.msra.mxu0 %v192
    %425 = vmatprep.subr.mxu0 0.0
    %426 = vmatpush1.msra.mxu0 %v193
    %427 = vmatprep.subr.mxu0 0.0
    %428 = vmatpush1.msra.mxu0 %v194
    %429 = vmatprep.subr.mxu0 0.0
    %430 = vmatpush1.msra.mxu0 %v195
    %431 = vmatprep.subr.mxu0 0.0
    %432 = vmatpush1.msra.mxu0 %v196
    %433 = vmatprep.subr.mxu0 0.0
    %434 = vmatpush1.msra.mxu0 %v197
    %435 = vmatprep.subr.mxu0 0.0
    %436 = vmatpush1.msra.mxu0 %v198
    %437 = vmatprep.subr.mxu0 0.0
    %438 = vmatpush1.msra.mxu0 %v199
    %439 = vmatprep.subr.mxu0 0.0
    %440 = vmatpush1.msra.mxu0 %v200
    %441 = vmatprep.subr.mxu0 0.0
    %442 = vmatpush1.msra.mxu0 %v201
    %443 = vmatprep.subr.mxu0 0.0
    %444 = vmatpush1.msra.mxu0 %v202
    %445 = vmatprep.subr.mxu0 0.0
    %446 = vmatpush1.msra.mxu0 %v203
    %447 = vmatprep.subr.mxu0 0.0
    %448 = vmatpush1.msra.mxu0 %v204
    %449 = vmatprep.subr.mxu0 0.0
    %450 = vmatpush1.msra.mxu0 %v205
    %451 = vmatprep.subr.mxu0 0.0
    %452 = vmatpush1.msra.mxu0 %v206
    %453 = vmatprep.subr.mxu0 0.0
    %454 = vmatpush1.msra.mxu0 %v207
    %455 = vmatprep.subr.mxu0 0.0
    %456 = vmatpush1.msra.mxu0 %v208
    %457 = vmatprep.subr.mxu0 0.0
    %458 = vmatpush1.msra.mxu0 %v209
    %459 = vmatprep.subr.mxu0 0.0
    %460 = vmatpush1.msra.mxu0 %v210
    %461 = vmatprep.subr.mxu0 0.0
    %462 = vmatpush1.msra.mxu0 %v211
    %463 = vmatprep.subr.mxu0 0.0
    %464 = vmatpush1.msra.mxu0 %v212
    %465 = vmatprep.subr.mxu0 0.0
    %466 = vmatpush1.msra.mxu0 %v213
    %467 = vmatprep.subr.mxu0 0.0
    %468 = vmatpush1.msra.mxu0 %v214
    %469 = vmatprep.subr.mxu0 0.0
    %470 = vmatpush1.msra.mxu0 %v215
    %471 = vmatprep.subr.mxu0 0.0
    %472 = vmatpush1.msra.mxu0 %v216
    %473 = vmatprep.mubr.f32.mxu0 %v52
    %474 = vmatmul.mubr.f32.gmra.mrb[0].mxu0 %v51
    %v475 = vpop.f32.mrb[0].mxu0
    %v476 = vadd.f32 %v371, %v475
    %v477 = vpop.f32.mrb[0].mxu0
    %478 = vmatprep.mubr.f32.mxu0 %v58
    %479 = vmatmul.mubr.f32.gmra.mrb[0].mxu0 %v57
    %v480 = vpop.f32.mrb[0].mxu0
    %v481 = vadd.f32 %v376, %v480
    %v482 = vpop.f32.mrb[0].mxu0
    %483 = vmatprep.mubr.f32.mxu0 %v64
    %484 = vmatmul.mubr.f32.gmra.mrb[0].mxu0 %v63
    %v485 = vpop.f32.mrb[0].mxu0
    %v486 = vadd.f32 %v381, %v485
    %v487 = vpop.f32.mrb[0].mxu0
    %488 = vmatprep.mubr.f32.mxu0 %v70
    %489 = vmatmul.mubr.f32.gmra.mrb[0].mxu0 %v69
    %v490 = vpop.f32.mrb[0].mxu0
    %v491 = vadd.f32 %v386, %v490
    %v492 = vpop.f32.mrb[0].mxu0
    %493 = vmatprep.mubr.f32.mxu0 %v76
    %494 = vmatmul.mubr.f32.gmra.mrb[0].mxu0 %v75
    %v495 = vpop.f32.mrb[0].mxu0
    %v496 = vadd.f32 %v391, %v495
    %v497 = vpop.f32.mrb[0].mxu0
    %498 = vmatprep.mubr.f32.mxu0 %v82
    %499 = vmatmul.mubr.f32.gmra.mrb[0].mxu0 %v81
    %v500 = vpop.f32.mrb[0].mxu0
    %v501 = vadd.f32 %v396, %v500
    %v502 = vpop.f32.mrb[0].mxu0
    %503 = vmatprep.mubr.f32.mxu0 %v88
    %504 = vmatmul.mubr.f32.gmra.mrb[0].mxu0 %v87
    %v505 = vpop.f32.mrb[0].mxu0
    %v506 = vadd.f32 %v401, %v505
    %v507 = vpop.f32.mrb[0].mxu0
    %508 = vmatprep.mubr.f32.mxu0 %v94
    %509 = vmatmul.mubr.f32.gmra.mrb[0].mxu0 %v93
    %v510 = vpop.f32.mrb[0].mxu0
    %v511 = vadd.f32 %v406, %v510
    %v512 = vpop.f32.mrb[0].mxu0
    %513 = vdwg.mxu0
    %514 = vmatprep.subr.mxu0 0.0
    %515 = vmatpush1.msra.mxu0 %v217
    %516 = vmatprep.subr.mxu0 0.0
    %517 = vmatpush1.msra.mxu0 %v218
    %518 = vmatprep.subr.mxu0 0.0
    %519 = vmatpush1.msra.mxu0 %v219
    %520 = vmatprep.subr.mxu0 0.0
    %521 = vmatpush1.msra.mxu0 %v220
    %522 = vmatprep.subr.mxu0 0.0
    %523 = vmatpush1.msra.mxu0 %v221
    %524 = vmatprep.subr.mxu0 0.0
    %525 = vmatpush1.msra.mxu0 %v222
    %526 = vmatprep.subr.mxu0 0.0
    %527 = vmatpush1.msra.mxu0 %v223
    %528 = vmatprep.subr.mxu0 0.0
    %529 = vmatpush1.msra.mxu0 %v224
    %530 = vmatprep.subr.mxu0 0.0
    %531 = vmatpush1.msra.mxu0 %v225
    %532 = vmatprep.subr.mxu0 0.0
    %533 = vmatpush1.msra.mxu0 %v226
    %534 = vmatprep.subr.mxu0 0.0
    %535 = vmatpush1.msra.mxu0 %v227
    %536 = vmatprep.subr.mxu0 0.0
    %537 = vmatpush1.msra.mxu0 %v228
    %538 = vmatprep.subr.mxu0 0.0
    %539 = vmatpush1.msra.mxu0 %v229
    %540 = vmatprep.subr.mxu0 0.0
    %541 = vmatpush1.msra.mxu0 %v230
    %542 = vmatprep.subr.mxu0 0.0
    %543 = vmatpush1.msra.mxu0 %v231
    %544 = vmatprep.subr.mxu0 0.0
    %545 = vmatpush1.msra.mxu0 %v232
    %546 = vmatprep.subr.mxu0 0.0
    %547 = vmatpush1.msra.mxu0 %v233
    %548 = vmatprep.subr.mxu0 0.0
    %549 = vmatpush1.msra.mxu0 %v234
    %550 = vmatprep.subr.mxu0 0.0
    %551 = vmatpush1.msra.mxu0 %v235
    %552 = vmatprep.subr.mxu0 0.0
    %553 = vmatpush1.msra.mxu0 %v236
    %554 = vmatprep.subr.mxu0 0.0
    %555 = vmatpush1.msra.mxu0 %v237
    %556 = vmatprep.subr.mxu0 0.0
    %557 = vmatpush1.msra.mxu0 %v238
    %558 = vmatprep.subr.mxu0 0.0
    %559 = vmatpush1.msra.mxu0 %v239
    %560 = vmatprep.subr.mxu0 0.0
    %561 = vmatpush1.msra.mxu0 %v240
    %562 = vmatprep.subr.mxu0 0.0
    %563 = vmatpush1.msra.mxu0 %v241
    %564 = vmatprep.subr.mxu0 0.0
    %565 = vmatpush1.msra.mxu0 %v242
    %566 = vmatprep.subr.mxu0 0.0
    %567 = vmatpush1.msra.mxu0 %v243
    %568 = vmatprep.subr.mxu0 0.0
    %569 = vmatpush1.msra.mxu0 %v244
    %570 = vmatprep.subr.mxu0 0.0
    %571 = vmatpush1.msra.mxu0 %v245
    %572 = vmatprep.subr.mxu0 0.0
    %573 = vmatpush1.msra.mxu0 %v246
    %574 = vmatprep.subr.mxu0 0.0
    %575 = vmatpush1.msra.mxu0 %v247
    %576 = vmatprep.subr.mxu0 0.0
    %577 = vmatpush1.msra.mxu0 %v248
    %578 = vmatprep.mubr.f32.mxu0 %v54
    %579 = vmatmul.mubr.f32.gmra.mrb[0].mxu0 %v53
    %v580 = vpop.f32.mrb[0].mxu0
    %v581 = vadd.f32 %v476, %v580
    %v582 = vpop.f32.mrb[0].mxu0
    %583 = vmatprep.mubr.f32.mxu0 %v60
    %584 = vmatmul.mubr.f32.gmra.mrb[0].mxu0 %v59
    %v585 = vpop.f32.mrb[0].mxu0
    %v586 = vadd.f32 %v481, %v585
    %v587 = vpop.f32.mrb[0].mxu0
    %588 = vmatprep.mubr.f32.mxu0 %v66
    %589 = vmatmul.mubr.f32.gmra.mrb[0].mxu0 %v65
    %v590 = vpop.f32.mrb[0].mxu0
    %v591 = vadd.f32 %v486, %v590
    %v592 = vpop.f32.mrb[0].mxu0
    %593 = vmatprep.mubr.f32.mxu0 %v72
    %594 = vmatmul.mubr.f32.gmra.mrb[0].mxu0 %v71
    %v595 = vpop.f32.mrb[0].mxu0
    %v596 = vadd.f32 %v491, %v595
    %v597 = vpop.f32.mrb[0].mxu0
    %598 = vmatprep.mubr.f32.mxu0 %v78
    %599 = vmatmul.mubr.f32.gmra.mrb[0].mxu0 %v77
    %v600 = vpop.f32.mrb[0].mxu0
    %v601 = vadd.f32 %v496, %v600
    %v602 = vpop.f32.mrb[0].mxu0
    %603 = vmatprep.mubr.f32.mxu0 %v84
    %604 = vmatmul.mubr.f32.gmra.mrb[0].mxu0 %v83
    %v605 = vpop.f32.mrb[0].mxu0
    %v606 = vadd.f32 %v501, %v605
    %v607 = vpop.f32.mrb[0].mxu0
    %608 = vmatprep.mubr.f32.mxu0 %v90
    %609 = vmatmul.mubr.f32.gmra.mrb[0].mxu0 %v89
    %v610 = vpop.f32.mrb[0].mxu0
    %v611 = vadd.f32 %v506, %v610
    %v612 = vpop.f32.mrb[0].mxu0
    %613 = vmatprep.mubr.f32.mxu0 %v96
    %614 = vmatmul.mubr.f32.gmra.mrb[0].mxu0 %v95
    %v615 = vpop.f32.mrb[0].mxu0
    %v616 = vadd.f32 %v511, %v615
    %v617 = vpop.f32.mrb[0].mxu0
    %618 = vdwg.mxu0
    %v619 = vld [vmem:[%s4] sm:$0x1]
    %v621 = vlaneseq
    %v622 = vshrl.u32 %v621, 7
    %v623 = vsub.s32 0, %v622
    %v624 = vrot.slane %v619, %v623
    %v626 = vadd.f32 %v581, %v624
    %v627 = vadd.f32 %v586, %v624
    %v628 = vadd.f32 %v591, %v624
    %v629 = vadd.f32 %v596, %v624
    %v630 = vadd.f32 %v601, %v624
    %v631 = vadd.f32 %v606, %v624
    %v632 = vadd.f32 %v611, %v624
    %v633 = vadd.f32 %v616, %v624
    %634 = vst [vmem:[#allocation7] sm:$0xff] %v626
    %635 = vst [vmem:[#allocation7 + $0x8] sm:$0xff] %v627
    %636 = vst [vmem:[#allocation7 + $0x10] sm:$0xff] %v628
    %637 = vst [vmem:[#allocation7 + $0x18] sm:$0xff] %v629
    %638 = vst [vmem:[#allocation7 + $0x20] sm:$0xff] %v630
    %639 = vst [vmem:[#allocation7 + $0x28] sm:$0xff] %v631
    %640 = vst [vmem:[#allocation7 + $0x30] sm:$0xff] %v632
    %641 = vst [vmem:[#allocation7 + $0x38] sm:$0xff] %v633
    // Predicated region
    $region30: #{tpu_custom_call.1} parent=1 // pred_check
      _
    $region31: #{tpu_custom_call.1} parent=1 // pred_check_branch
      %643 = sbr.rel (0) target = $region33
    $region32: #{tpu_custom_call.1} parent=1 // pred_region
      %s645 = ssub.s32 1024, 1024
      %646 = vsyncadd [#allocation4], %s645
      %s647 = sshll.u32 [#allocation7], 4
      %s648 = int_to_ptr.vmem [resolvable:$true] %s647
      %653 = dma.vmem_to_hbm [thread:$0]  %s648, 1024, %s5, [#allocation4], 128, 128, 8
    $region33: #{tpu_custom_call.1} parent=1 // pred_fallthru
      _
    // Predicated region
    $region34: #{tpu_custom_call.1} parent=1 // pred_check
      _
    $region35: #{tpu_custom_call.1} parent=1 // pred_check_branch
      %655 = sbr.rel (0) target = $region37
    $region36: #{tpu_custom_call.1} parent=1 // pred_region
      %656 = dma.done [#allocation4], 1024
    $region37: #{tpu_custom_call.1} parent=1 // pred_fallthru
      _
    %657 = vsyncpa [#allocation3], 1
    %658 = vsyncpa [#allocation6], 1
    %659 = vsyncpa [#allocation4], 1

</llo_original>
